<compile_context>
chip_gen: v7x
topology: tpu7x:2x2x1
jax: 0.10.0
libtpu: 0.0.40
codegen_flags: <defaults>
</compile_context>

<pallas_src>
import math
import numpy as np
import jax
import jax.numpy as jnp
from jax.experimental import pallas as pl
from jax.experimental.pallas import tpu as pltpu


def _host_tables(axes_dim, theta):
    """(n_axes, 4*D) quad-interleaved frequency table + (1, 4*D) phase row."""
    half = [d // 2 for d in axes_dim]
    D = int(sum(half))
    offs = np.cumsum([0] + half)
    n_axes = len(axes_dim)

    w4 = np.zeros((n_axes, 4 * D), dtype=np.float64)
    for i, dim_i in enumerate(axes_dim):
        omega = 1.0 / theta ** (np.arange(0, dim_i, 2, dtype=np.float64) / dim_i)
        for k in range(4):
            w4[i, 4 * offs[i] + k: 4 * (offs[i] + half[i]): 4] = omega

    # quad layout per frequency d: [cos a, -sin a, sin a, cos a]
    #   cos a = sin(a + pi/2), -sin a = sin(a + pi), sin a = sin(a + 0)
    phase = np.tile(
        np.asarray([0.5 * math.pi, math.pi, 0.0, 0.5 * math.pi], dtype=np.float64),
        D)[None, :]
    return D, w4.astype(np.float32), phase.astype(np.float32)


def embed_nd(ids: jax.Array, axes_dim, theta: int, *, max_tile: int = 1024) -> jax.Array:
    """JAX/Pallas equivalent of EmbedND.forward. ids: (B, N, n_axes) int."""
    B, N, n_axes = ids.shape
    assert n_axes == len(axes_dim)
    D, w4, phase = _host_tables(axes_dim, theta)

    M = B * N
    ids2 = ids.reshape(M, n_axes)

    if M <= max_tile:
        tile = M                      # block spans the whole row axis
    else:
        tile = (max_tile // 8) * 8    # keep the sublane dim a multiple of 8
    grid = (pl.cdiv(M, tile),)

    def kernel(ids_ref, w_ref, phase_ref, out_ref):
        # ids_ref: (tile, n_axes) int32; out_ref: (tile, 4*D) f32 quads.
        pos = ids_ref[...].astype(jnp.float32)
        w = w_ref[...]
        # TODO(synk): angles are built in f32 (no f64 on the TensorCore);
        #             PyTorch computes pos*omega in f64 before casting.
        ang = pos[:, 0:1] * w[0:1, :]                       # (tile, 4*D)
        for i in range(1, n_axes):
            ang = ang + pos[:, i:i + 1] * w[i:i + 1, :]
        out_ref[...] = jnp.sin(ang + phase_ref[...])        # [c, -s, s, c] quads

    quad = pl.pallas_call(
        kernel,
        out_shape=jax.ShapeDtypeStruct((M, 4 * D), jnp.float32),
        grid_spec=pltpu.PrefetchScalarGridSpec(
            num_scalar_prefetch=0,
            grid=grid,
            in_specs=[
                pl.BlockSpec((tile, n_axes), lambda r: (r, 0)),
                pl.BlockSpec((n_axes, 4 * D), lambda r: (0, 0)),
                pl.BlockSpec((1, 4 * D), lambda r: (0, 0)),
            ],
            out_specs=pl.BlockSpec((tile, 4 * D), lambda r: (r, 0)),
        ),
        compiler_params=pltpu.CompilerParams(
            dimension_semantics=("parallel",)),
    )(ids2, jnp.asarray(w4), jnp.asarray(phase))

    # Free metadata reshape: (M, 4D) row-major == (B, N, D, 2, 2) row-major.
    return quad.reshape(B, N, D, 2, 2)[:, None]   # unsqueeze(1)


def _reference_numpy(ids_np, axes_dim, theta):
    """Pure-numpy port of the PyTorch forward, for verification."""
    outs = []
    for i, dim in enumerate(axes_dim):
        pos = ids_np[..., i].astype(np.float64)                       # (B, N)
        scale = np.arange(0, dim, 2, dtype=np.float64) / dim
        omega = 1.0 / theta ** scale                                  # (dim//2,)
        ang = np.einsum("bn,d->bnd", pos, omega)                      # (B, N, dim//2)
        out = np.stack([np.cos(ang), -np.sin(ang), np.sin(ang), np.cos(ang)], axis=-1)
        out = out.reshape(*out.shape[:-1], 2, 2)
        outs.append(out.astype(np.float32))
    emb = np.concatenate(outs, axis=-3)                               # (B, N, D, 2, 2)
    return emb[:, None]                                               # (B, 1, N, D, 2, 2)


if __name__ == "__main__":
    key = jax.random.PRNGKey(0)
    B, N = 2, 8
    axes_dim = [16, 24, 24]   # embedding dim 64, D = 32 -> 4*D = 128 (lane-dense)
    theta = 10000

    ids = jax.random.randint(key, (B, N, len(axes_dim)), 0, 16, dtype=jnp.int32)

    out = embed_nd(ids, axes_dim, theta)
    out = jax.block_until_ready(out)

    ref = _reference_numpy(np.asarray(ids), axes_dim, theta)
    assert out.shape == ref.shape, (out.shape, ref.shape)
    # f32 angles / f32 transcendentals on TPU vs the f64 reference.
    np.testing.assert_allclose(np.asarray(out), ref, rtol=3e-5, atol=3e-5)

    print("KERNEL_OK")
</pallas_src>

<mosaic_0001>
module attributes {stable_mosaic.version = 11 : i64} {
  func.func @kernel(%arg0: i32, %arg1: memref<16x3xi32, #tpu.memory_space<vmem>>, %arg2: memref<3x128xf32, #tpu.memory_space<vmem>>, %arg3: memref<1x128xf32, #tpu.memory_space<vmem>>, %arg4: memref<16x128xf32, #tpu.memory_space<vmem>>) attributes {dimension_semantics = [#tpu.dimension_semantics<parallel>], iteration_bounds = array<i64: 1>, scalar_prefetch = 0 : i64, scratch_operands = 0 : i64, tpu.core_type = #tpu.core_type<tc>, window_params = [{transform_indices = @transform_0, window_bounds = array<i64: 16, 3>}, {pipeline_mode = #tpu.pipeline_mode<synchronous>, transform_indices = @transform_1, window_bounds = array<i64: 3, 128>}, {pipeline_mode = #tpu.pipeline_mode<synchronous>, transform_indices = @transform_2, window_bounds = array<i64: 1, 128>}, {transform_indices = @transform_3, window_bounds = array<i64: 16, 128>}]} {
    %c0 = arith.constant 0 : index
    %c0_0 = arith.constant 0 : index
    %0 = vector.load %arg1[%c0, %c0_0] : memref<16x3xi32, #tpu.memory_space<vmem>>, vector<16x3xi32>
    %1 = arith.sitofp %0 : vector<16x3xi32> to vector<16x3xf32>
    %c0_1 = arith.constant 0 : index
    %c0_2 = arith.constant 0 : index
    %2 = vector.load %arg2[%c0_1, %c0_2] : memref<3x128xf32, #tpu.memory_space<vmem>>, vector<3x128xf32>
    %3 = vector.extract_strided_slice %1 {offsets = [0, 0], sizes = [16, 1], strides = [1, 1]} : vector<16x3xf32> to vector<16x1xf32>
    %4 = vector.extract_strided_slice %2 {offsets = [0, 0], sizes = [1, 128], strides = [1, 1]} : vector<3x128xf32> to vector<1x128xf32>
    %5 = vector.broadcast %3 : vector<16x1xf32> to vector<16x128xf32>
    %6 = vector.broadcast %4 : vector<1x128xf32> to vector<16x128xf32>
    %7 = arith.mulf %5, %6 : vector<16x128xf32>
    %8 = vector.extract_strided_slice %1 {offsets = [0, 1], sizes = [16, 1], strides = [1, 1]} : vector<16x3xf32> to vector<16x1xf32>
    %9 = vector.extract_strided_slice %2 {offsets = [1, 0], sizes = [1, 128], strides = [1, 1]} : vector<3x128xf32> to vector<1x128xf32>
    %10 = vector.broadcast %8 : vector<16x1xf32> to vector<16x128xf32>
    %11 = vector.broadcast %9 : vector<1x128xf32> to vector<16x128xf32>
    %12 = arith.mulf %10, %11 : vector<16x128xf32>
    %13 = arith.addf %7, %12 : vector<16x128xf32>
    %14 = vector.extract_strided_slice %1 {offsets = [0, 2], sizes = [16, 1], strides = [1, 1]} : vector<16x3xf32> to vector<16x1xf32>
    %15 = vector.extract_strided_slice %2 {offsets = [2, 0], sizes = [1, 128], strides = [1, 1]} : vector<3x128xf32> to vector<1x128xf32>
    %16 = vector.broadcast %14 : vector<16x1xf32> to vector<16x128xf32>
    %17 = vector.broadcast %15 : vector<1x128xf32> to vector<16x128xf32>
    %18 = arith.mulf %16, %17 : vector<16x128xf32>
    %19 = arith.addf %13, %18 : vector<16x128xf32>
    %c0_3 = arith.constant 0 : index
    %c0_4 = arith.constant 0 : index
    %20 = vector.load %arg3[%c0_3, %c0_4] : memref<1x128xf32, #tpu.memory_space<vmem>>, vector<1x128xf32>
    %21 = vector.broadcast %20 : vector<1x128xf32> to vector<16x128xf32>
    %22 = arith.addf %19, %21 : vector<16x128xf32>
    %23 = math.sin %22 : vector<16x128xf32>
    %c0_5 = arith.constant 0 : index
    %c0_6 = arith.constant 0 : index
    %24 = vector.load %arg4[%c0_5, %c0_6] : memref<16x128xf32, #tpu.memory_space<vmem>>, vector<16x128xf32>
    tpu.vector_store %arg4[%c0_5, %c0_6], %23 {strides = array<i32>} : memref<16x128xf32, #tpu.memory_space<vmem>>, vector<16x128xf32>,
    return
  }
  func.func @transform_0(%arg0: i32) -> (i32, i32) {
    %c0_i32 = arith.constant 0 : i32
    %c0_i32_0 = arith.constant 0 : i32
    return %arg0, %c0_i32 : i32, i32
  }
  func.func @transform_1(%arg0: i32) -> (i32, i32) {
    %c0_i32 = arith.constant 0 : i32
    %c0_i32_0 = arith.constant 0 : i32
    %c0_i32_1 = arith.constant 0 : i32
    return %c0_i32, %c0_i32_0 : i32, i32
  }
  func.func @transform_2(%arg0: i32) -> (i32, i32) {
    %c0_i32 = arith.constant 0 : i32
    %c0_i32_0 = arith.constant 0 : i32
    %c0_i32_1 = arith.constant 0 : i32
    return %c0_i32, %c0_i32_0 : i32, i32
  }
  func.func @transform_3(%arg0: i32) -> (i32, i32) {
    %c0_i32 = arith.constant 0 : i32
    %c0_i32_0 = arith.constant 0 : i32
    return %arg0, %c0_i32 : i32, i32
  }
}

</mosaic_0001>

<llo_original>
// kernel: tpu_custom_call.1
$region0: #{tpu_custom_call.1}
  #allocation0 [shape = 'u32[]', space=smem, size = 0x4, offset = 0x4, fixed_abs, tag = 'smem constant byte address 0x4 - core index']
  #allocation1 [shape = 'u32[144,128]{1,0:T(1,128)}', space=vmem, size = 0x12000, scoped, tag = 'internal scratch']
  %s0 = inlined_call_operand.vmem [shape: s32[16,3], index: 0, kind: input, shape index: {}]
  %s1 = inlined_call_operand.vmem [shape: f32[3,128], index: 1, kind: input, shape index: {}]
  %s2 = inlined_call_operand.vmem [shape: f32[1,128], index: 2, kind: input, shape index: {}]
  %s3 = inlined_call_operand.hbm [shape: f32[16,128], index: 3, kind: output, shape index: {}]
  %s4 = sld [smem:[#allocation0]]
  $region22: #{tpu_custom_call.1} parent=0
    _
  %s6 = ssub.s32 1, %s4
  %s7 = scalar_select 0, %s6, %s4
  $region1: #{tpu_custom_call.1} parent=0
    #allocation2 [shape = 'u8[8192]{0}', space=vmem, size = 0x2000, scoped, tag = 'output window, operand 0, single buffered']
    #allocation3 [shape = 's32[1]{0}', space=sflag, size = 0x4, scoped, tag = 'scoped memory for tpu_custom_call.1']
    %8 = vsyncpa [#allocation3], 0
    // Predicated region
    $region2: #{tpu_custom_call.1} parent=1 // pred_check
      _
    $region3: #{tpu_custom_call.1} parent=1 // pred_check_branch
      %10 = sbr.rel (0) target = $region5
    $region4: #{tpu_custom_call.1} parent=1 // pred_region
      _
    $region5: #{tpu_custom_call.1} parent=1 // pred_fallthru
      _
    // Predicated region
    $region6: #{tpu_custom_call.1} parent=1 // pred_check
      _
    $region7: #{tpu_custom_call.1} parent=1 // pred_check_branch
      %12 = sbr.rel (0) target = $region9
    $region8: #{tpu_custom_call.1} parent=1 // pred_region
      _
    $region9: #{tpu_custom_call.1} parent=1 // pred_fallthru
      _
    // Predicated region
    $region10: #{tpu_custom_call.1} parent=1 // pred_check
      _
    $region11: #{tpu_custom_call.1} parent=1 // pred_check_branch
      %14 = sbr.rel (0) target = $region13
    $region12: #{tpu_custom_call.1} parent=1 // pred_region
      _
    $region13: #{tpu_custom_call.1} parent=1 // pred_fallthru
      _
    %v15 = vld [vmem:[%s0] sm:$0xff]
    %v16 = vld [vmem:[%s0 + $0x8] sm:$0xff]
    %v17 = vcvt.s32.f32 %v15
    %v18 = vcvt.s32.f32 %v16
    %v19 = vld [vmem:[%s1] sm:$0x7]
    %21 = vset.pattern.permute.xlu0 0
    %22 = vperm.xlu0 %21, %v17
    %v23 = vpop.permute.xlu0 %22
    %26 = vset.pattern.permute.xlu0 0
    %27 = vperm.xlu0 %26, %v18
    %v28 = vpop.permute.xlu0 %27
    %v30 = vlaneseq
    %v31 = vshrl.u32 %v30, 7
    %v32 = vsub.s32 0, %v31
    %v33 = vrot.slane %v19, %v32
    %v34 = vmul.f32 %v23, %v33
    %v35 = vmul.f32 %v28, %v33
    %36 = vset.pattern.permute.xlu0 1
    %37 = vperm.xlu0 %36, %v17
    %v38 = vpop.permute.xlu0 %37
    %40 = vset.pattern.permute.xlu0 1
    %41 = vperm.xlu0 %40, %v18
    %v42 = vpop.permute.xlu0 %41
    %v44 = vlaneseq
    %v45 = vshrl.u32 %v44, 7
    %v46 = vsub.s32 1, %v45
    %v47 = vrot.slane %v19, %v46
    %v48 = vmul.f32 %v38, %v47
    %v49 = vmul.f32 %v42, %v47
    %v50 = vadd.f32 %v34, %v48
    %v51 = vadd.f32 %v35, %v49
    %52 = vset.pattern.permute.xlu0 2
    %53 = vperm.xlu0 %52, %v17
    %v54 = vpop.permute.xlu0 %53
    %56 = vset.pattern.permute.xlu0 2
    %57 = vperm.xlu0 %56, %v18
    %v58 = vpop.permute.xlu0 %57
    %v60 = vlaneseq
    %v61 = vshrl.u32 %v60, 7
    %v62 = vsub.s32 2, %v61
    %v63 = vrot.slane %v19, %v62
    %v64 = vmul.f32 %v54, %v63
    %v65 = vmul.f32 %v58, %v63
    %v66 = vadd.f32 %v50, %v64
    %v67 = vadd.f32 %v51, %v65
    %v68 = vld [vmem:[%s2] sm:$0x1]
    %v70 = vlaneseq
    %v71 = vshrl.u32 %v70, 7
    %v72 = vsub.s32 0, %v71
    %v73 = vrot.slane %v68, %v72
    %v75 = vadd.f32 %v66, %v73
    %v76 = vadd.f32 %v67, %v73
    %v77 = vand.u32 2147483647, %v75
    %vm78 = vcmp.le.f32.partialorder %v77, 0.7853982
    %vm79 = vcmp.lt.s32.totalorder %v75, 0
    %v80 = vand.u32 %v75, 2139095040
    %v81 = vshrl.u32 %v80, 23
    %v82 = vsub.s32 %v81, 127
    %v83 = vand.u32 2147483647, %v75
    %v84 = vand.u32 %v83, 8388607
    %v85 = vor.u32 %v84, 8388608
    %v86 = vsub.s32 0, %v85
    %v87 = vadd.s32 %v82, 1
    %vm88 = vcmp.gt.s32.totalorder %v87, 0
    %v89 = vsel %vm88, %v87, 0
    %v90 = vshrl.u32 %v89, 5
    %v91 = vand.u32 %v89, 31
    %v92 = vsub.s32 32, %v91
    %v93 = vshrl.u32 683565275, %v92
    %v94 = vshll.u32 683565275, %v91
    %v95 = vshrl.u32 2475754826, %v92
    %v96 = vor.u32 %v94, %v95
    %v97 = vshll.u32 2475754826, %v91
    %v98 = vshrl.u32 2131351028, %v92
    %v99 = vor.u32 %v97, %v98
    %v100 = vshll.u32 2131351028, %v91
    %v101 = vshrl.u32 2102212464, %v92
    %v102 = vor.u32 %v100, %v101
    %v103 = vshll.u32 2102212464, %v91
    %v104 = vshrl.u32 920167782, %v92
    %v105 = vor.u32 %v103, %v104
    %v106 = vshll.u32 920167782, %v91
    %v107 = vshrl.u32 1326507024, %v92
    %v108 = vor.u32 %v106, %v107
    %vm109 = vcmp.lt.s32.totalorder %v90, 1
    %vm110 = vcmp.lt.s32.totalorder %v90, 2
    %vm111 = vcmp.lt.s32.totalorder %v90, 3
    %vm112 = vcmp.lt.s32.totalorder %v90, 4
    %v113 = vsel %vm109, %v93, %v96
    %v114 = vsel %vm112, %v102, 2102212464
    %v115 = vsel %vm111, %v99, %v114
    %v116 = vsel %vm110, %v113, %v115
    %v117 = vsel %vm109, %v96, %v99
    %v118 = vsel %vm112, %v105, 920167782
    %v119 = vsel %vm111, %v102, %v118
    %v120 = vsel %vm110, %v117, %v119
    %v121 = vsel %vm109, %v99, %v102
    %v122 = vsel %vm112, %v108, 1326507024
    %v123 = vsel %vm111, %v105, %v122
    %v124 = vsel %vm110, %v121, %v123
    %v125 = vshll.u32 %v85, 8
    %v126 = vmul.u32.u64.compose %v125, %v124
    %v127 = vextract.low.u32 %v126
    %v128 = vextract.high.u32 %v126
    %v129 = vmul.u32.u64.compose %v125, %v120
    %v130 = vextract.low.u32 %v129
    %v131 = vextract.high.u32 %v129
    %v132 = vmul.u32 %v125, %v116
    %v133 = vadd.s32 %v128, %v130
    %vm134 = vc.u32 %v128, %v130
    %v135 = vadd.s32 %v131, 1
    %v136 = vsel %vm134, %v135, %v131
    %v137 = vadd.s32 %v132, %v136
    %v138 = vadd.s32 %v137, 536870912
    %v139 = vshrl.u32 %v138, 30
    %v140 = vshll.u32 %v139, 30
    %v141 = vsub.s32 %v137, %v140
    %vm142 = vcmp.lt.s32.totalorder %v141, 0
    %v143 = vsub.s32 0, %v141
    %v144 = vsel %vm142, %v143, %v141
    %v145 = vclz %v144
    %v146 = vsub.s32 %v145, 2
    %vm147 = vcmp.gt.s32.totalorder 0, %v146
    %v148 = vsel %vm147, 0, %v146
    %v149 = vsub.s32 32, %v148
    %v150 = vshll.u32 %v141, %v148
    %v151 = vshrl.u32 %v133, %v149
    %v152 = vor.u32 %v150, %v151
    %v153 = vsub.s32 4294967266, %v148
    %v154 = vadd.s32 %v153, 127
    %v155 = vshll.u32 %v154, 23
    %v156 = vor.u32 4788187, %v155
    %v157 = vand.u32 2147483647, %v156
    %v159 = vcvt.s32.f32 %v152
    %v160 = vmul.f32 %v159, %v157
    %v161 = vxor.u32 %v160, 2147483648
    %v162 = vsel %vm79, %v161, %v160
    %v163 = vsub.s32 4, %v139
    %v164 = vsel %vm79, %v163, %v139
    %v165 = vsel %vm78, %v75, %v162
    %v166 = vsel %vm78, 0, %v164
    %v167 = vcosq.f32.pop %v165
    %v168 = vsinq.f32.pop %v165
    %vm169 = vweird.f32 %v75
    %v170 = vadd.s32 %v166, 3
    %v171 = vand.u32 %v170, 3
    %vm172 = vcmp.lt.s32.totalorder %v171, 2
    %vm173 = vcmp.eq.s32.totalorder %v171, 0
    %v174 = vxor.u32 %v168, 2147483648
    %v175 = vsel %vm173, %v167, %v174
    %vm176 = vcmp.eq.s32.totalorder %v171, 2
    %v177 = vxor.u32 %v167, 2147483648
    %v178 = vsel %vm176, %v177, %v168
    %v179 = vsel %vm172, %v175, %v178
    %v180 = vsel %vm169, nan, %v179
    %v181 = vand.u32 2147483647, %v76
    %vm182 = vcmp.le.f32.partialorder %v181, 0.7853982
    %vm183 = vcmp.lt.s32.totalorder %v76, 0
    %v184 = vand.u32 %v76, 2139095040
    %v185 = vshrl.u32 %v184, 23
    %v186 = vsub.s32 %v185, 127
    %v187 = vand.u32 2147483647, %v76
    %v188 = vand.u32 %v187, 8388607
    %v189 = vor.u32 %v188, 8388608
    %v190 = vsub.s32 0, %v189
    %v191 = vadd.s32 %v186, 1
    %vm192 = vcmp.gt.s32.totalorder %v191, 0
    %v193 = vsel %vm192, %v191, 0
    %v194 = vshrl.u32 %v193, 5
    %v195 = vand.u32 %v193, 31
    %v196 = vsub.s32 32, %v195
    %v197 = vshrl.u32 683565275, %v196
    %v198 = vshll.u32 683565275, %v195
    %v199 = vshrl.u32 2475754826, %v196
    %v200 = vor.u32 %v198, %v199
    %v201 = vshll.u32 2475754826, %v195
    %v202 = vshrl.u32 2131351028, %v196
    %v203 = vor.u32 %v201, %v202
    %v204 = vshll.u32 2131351028, %v195
    %v205 = vshrl.u32 2102212464, %v196
    %v206 = vor.u32 %v204, %v205
    %v207 = vshll.u32 2102212464, %v195
    %v208 = vshrl.u32 920167782, %v196
    %v209 = vor.u32 %v207, %v208
    %v210 = vshll.u32 920167782, %v195
    %v211 = vshrl.u32 1326507024, %v196
    %v212 = vor.u32 %v210, %v211
    %vm213 = vcmp.lt.s32.totalorder %v194, 1
    %vm214 = vcmp.lt.s32.totalorder %v194, 2
    %vm215 = vcmp.lt.s32.totalorder %v194, 3
    %vm216 = vcmp.lt.s32.totalorder %v194, 4
    %v217 = vsel %vm213, %v197, %v200
    %v218 = vsel %vm216, %v206, 2102212464
    %v219 = vsel %vm215, %v203, %v218
    %v220 = vsel %vm214, %v217, %v219
    %v221 = vsel %vm213, %v200, %v203
    %v222 = vsel %vm216, %v209, 920167782
    %v223 = vsel %vm215, %v206, %v222
    %v224 = vsel %vm214, %v221, %v223
    %v225 = vsel %vm213, %v203, %v206
    %v226 = vsel %vm216, %v212, 1326507024
    %v227 = vsel %vm215, %v209, %v226
    %v228 = vsel %vm214, %v225, %v227
    %v229 = vshll.u32 %v189, 8
    %v230 = vmul.u32.u64.compose %v229, %v228
    %v231 = vextract.low.u32 %v230
    %v232 = vextract.high.u32 %v230
    %v233 = vmul.u32.u64.compose %v229, %v224
    %v234 = vextract.low.u32 %v233
    %v235 = vextract.high.u32 %v233
    %v236 = vmul.u32 %v229, %v220
    %v237 = vadd.s32 %v232, %v234
    %vm238 = vc.u32 %v232, %v234
    %v239 = vadd.s32 %v235, 1
    %v240 = vsel %vm238, %v239, %v235
    %v241 = vadd.s32 %v236, %v240
    %v242 = vadd.s32 %v241, 536870912
    %v243 = vshrl.u32 %v242, 30
    %v244 = vshll.u32 %v243, 30
    %v245 = vsub.s32 %v241, %v244
    %vm246 = vcmp.lt.s32.totalorder %v245, 0
    %v247 = vsub.s32 0, %v245
    %v248 = vsel %vm246, %v247, %v245
    %v249 = vclz %v248
    %v250 = vsub.s32 %v249, 2
    %vm251 = vcmp.gt.s32.totalorder 0, %v250
    %v252 = vsel %vm251, 0, %v250
    %v253 = vsub.s32 32, %v252
    %v254 = vshll.u32 %v245, %v252
    %v255 = vshrl.u32 %v237, %v253
    %v256 = vor.u32 %v254, %v255
    %v257 = vsub.s32 4294967266, %v252
    %v258 = vadd.s32 %v257, 127
    %v259 = vshll.u32 %v258, 23
    %v260 = vor.u32 4788187, %v259
    %v261 = vand.u32 2147483647, %v260
    %v263 = vcvt.s32.f32 %v256
    %v264 = vmul.f32 %v263, %v261
    %v265 = vxor.u32 %v264, 2147483648
    %v266 = vsel %vm183, %v265, %v264
    %v267 = vsub.s32 4, %v243
    %v268 = vsel %vm183, %v267, %v243
    %v269 = vsel %vm182, %v76, %v266
    %v270 = vsel %vm182, 0, %v268
    %v271 = vcosq.f32.pop %v269
    %v272 = vsinq.f32.pop %v269
    %vm273 = vweird.f32 %v76
    %v274 = vadd.s32 %v270, 3
    %v275 = vand.u32 %v274, 3
    %vm276 = vcmp.lt.s32.totalorder %v275, 2
    %vm277 = vcmp.eq.s32.totalorder %v275, 0
    %v278 = vxor.u32 %v272, 2147483648
    %v279 = vsel %vm277, %v271, %v278
    %vm280 = vcmp.eq.s32.totalorder %v275, 2
    %v281 = vxor.u32 %v271, 2147483648
    %v282 = vsel %vm280, %v281, %v272
    %v283 = vsel %vm276, %v279, %v282
    %v284 = vsel %vm273, nan, %v283
    %285 = vst [vmem:[#allocation2] sm:$0xff] %v180
    %286 = vst [vmem:[#allocation2 + $0x8] sm:$0xff] %v284
    // Predicated region
    $region14: #{tpu_custom_call.1} parent=1 // pred_check
      _
    $region15: #{tpu_custom_call.1} parent=1 // pred_check_branch
      %288 = sbr.rel (0) target = $region17
    $region16: #{tpu_custom_call.1} parent=1 // pred_region
      %s290 = ssub.s32 256, 256
      %291 = vsyncadd [#allocation3], %s290
      %s292 = sshll.u32 [#allocation2], 4
      %s293 = int_to_ptr.vmem [resolvable:$true] %s292
      %298 = dma.vmem_to_hbm [thread:$0]  %s293, 256, %s3, [#allocation3], 128, 128, 8
    $region17: #{tpu_custom_call.1} parent=1 // pred_fallthru
      _
    // Predicated region
    $region18: #{tpu_custom_call.1} parent=1 // pred_check
      _
    $region19: #{tpu_custom_call.1} parent=1 // pred_check_branch
      %300 = sbr.rel (0) target = $region21
    $region20: #{tpu_custom_call.1} parent=1 // pred_region
      %301 = dma.done [#allocation3], 256
    $region21: #{tpu_custom_call.1} parent=1 // pred_fallthru
      _
    %302 = vsyncpa [#allocation3], 1

</llo_original>
